<compile_context>
chip_gen: v7x
topology: tpu7x:2x2x1
jax: 0.10.0
libtpu: 0.0.40
codegen_flags: <defaults>
</compile_context>

<pallas_src>
import functools

import jax
import jax.numpy as jnp
import numpy as np
from jax.experimental import pallas as pl
from jax.experimental.pallas import tpu as pltpu


def _triplet_kernel(x_ref, w1_ref, b1_ref, wdw_ref, b2_ref, w3_ref, b3_ref,
                    mask_ref, o_ref, *, H, W, KH, KW):
    """One batch element in lane-dense (C, H*W) layout."""
    HW = H * W
    x = x_ref[0]                                            # (Cin, HW) f32

    # ---- 1x1 pointwise conv (expand); BN scale pre-folded into w1 (MXU) ----
    h1 = jnp.dot(w1_ref[...], x, preferred_element_type=jnp.float32)
    h1 = jnp.maximum(h1 + b1_ref[...], 0.0)                 # (Cmid, HW)

    # ---- 3x3 depthwise conv, stride 1, zero pad 1 (lane roll + halo mask) ----
    wdw = wdw_ref[...]                                      # (Cmid, KH*KW), load once
    masks = mask_ref[...]                                   # (KH*KW, HW),   load once
    acc = jnp.zeros_like(h1)
    for dy in range(-(KH // 2), KH // 2 + 1):
        for dx in range(-(KW // 2), KW // 2 + 1):
            t = (dy + KH // 2) * KW + (dx + KW // 2)
            delta = dy * W + dx                              # flat-index offset
            if delta == 0:
                shifted = h1
            else:
                # shifted[:, i] = h1[:, (i + delta) mod HW]; wrapped positions
                # are zeroed by the precomputed halo mask below.
                shifted = pltpu.roll(h1, (-delta) % HW, axis=1)
            contrib = shifted * wdw[:, t:t + 1]              # per-channel tap
            if dy != 0 or dx != 0:
                contrib = contrib * masks[t:t + 1, :]        # halo zeros
            acc = acc + contrib
    h2 = jnp.maximum(acc + b2_ref[...], 0.0)                 # (Cmid, HW)

    # ---- 1x1 pointwise conv (project); BN folded, no activation yet (MXU) ----
    y = jnp.dot(w3_ref[...], h2, preferred_element_type=jnp.float32)

    # ---- identity residual add, then the (moved) final ReLU ----
    o_ref[0] = jnp.maximum(y + b3_ref[...] + x, 0.0).astype(o_ref.dtype)


def _build_tap_masks(H, W, KH, KW):
    """Static (KH*KW, H*W) {0,1} masks: tap (dy,dx) valid at pixel (h,w)."""
    hh, ww = np.meshgrid(np.arange(H), np.arange(W), indexing="ij")
    masks = []
    for dy in range(-(KH // 2), KH // 2 + 1):
        for dx in range(-(KW // 2), KW // 2 + 1):
            valid = ((hh + dy >= 0) & (hh + dy < H) &
                     (ww + dx >= 0) & (ww + dx < W))
            masks.append(valid.reshape(-1).astype(np.float32))
    return jnp.asarray(np.stack(masks, axis=0))


def conv_dw_triplet_res_2d(x_nchw, params):
    """x_nchw: (N, Cin, H, W) float32.  Returns (N, Cout, H, W) float32."""
    w1, b1, wdw, b2, w3, b3 = params
    N, Cin, H, W = x_nchw.shape
    Cmid = w1.shape[0]
    Cout = w3.shape[0]
    KHKW = wdw.shape[1]
    KH = KW = int(round(KHKW ** 0.5))
    HW = H * W

    x = x_nchw.reshape(N, Cin, HW)                # free reshape; no transpose
    masks = _build_tap_masks(H, W, KH, KW)        # (KH*KW, HW) static consts

    kernel = functools.partial(_triplet_kernel, H=H, W=W, KH=KH, KW=KW)

    out = pl.pallas_call(
        kernel,
        out_shape=jax.ShapeDtypeStruct((N, Cout, HW), jnp.float32),
        grid_spec=pltpu.PrefetchScalarGridSpec(
            num_scalar_prefetch=0,
            grid=(N,),
            in_specs=[
                pl.BlockSpec((1, Cin, HW), lambda n: (n, 0, 0)),
                pl.BlockSpec((Cmid, Cin), lambda n: (0, 0)),
                pl.BlockSpec((Cmid, 1), lambda n: (0, 0)),
                pl.BlockSpec((Cmid, KHKW), lambda n: (0, 0)),
                pl.BlockSpec((Cmid, 1), lambda n: (0, 0)),
                pl.BlockSpec((Cout, Cmid), lambda n: (0, 0)),
                pl.BlockSpec((Cout, 1), lambda n: (0, 0)),
                pl.BlockSpec((KHKW, HW), lambda n: (0, 0)),
            ],
            out_specs=pl.BlockSpec((1, Cout, HW), lambda n: (n, 0, 0)),
        ),
        compiler_params=pltpu.CompilerParams(
            # Batch elements are independent -> shard across the 2 TCs on v7x.
            # For realistic H*W*C, additionally tile over spatial rows and set
            # vmem_limit_bytes here (v7x has 64 MiB VMEM vs 128 MiB on v6e).
            dimension_semantics=("parallel",)),
    )(x, w1, b1, wdw, b2, w3, b3, masks)

    return out.reshape(N, Cout, H, W)


def make_params(key, cin, cmid, cout, kh=3, kw=3, eps=1e-5):
    """Deterministic synthetic params; eval-mode BN folded into weights+bias."""
    ks = jax.random.split(key, 16)
    # PyTorch-shaped conv weights.
    w1_t = 0.2 * jax.random.normal(ks[0], (cmid, cin, 1, 1), jnp.float32)
    wdw_t = 0.2 * jax.random.normal(ks[1], (cmid, 1, kh, kw), jnp.float32)
    w3_t = 0.2 * jax.random.normal(ks[2], (cout, cmid, 1, 1), jnp.float32)

    def bn(k0, k1, k2, k3, c):
        gamma = 1.0 + 0.1 * jax.random.normal(k0, (c,), jnp.float32)
        beta = 0.1 * jax.random.normal(k1, (c,), jnp.float32)
        mean = 0.1 * jax.random.normal(k2, (c,), jnp.float32)
        var = jnp.abs(jax.random.normal(k3, (c,), jnp.float32)) + 0.5
        scale = gamma / jnp.sqrt(var + eps)
        bias = beta - mean * scale
        return scale, bias

    s1, b1 = bn(ks[3], ks[4], ks[5], ks[6], cmid)
    s2, b2 = bn(ks[7], ks[8], ks[9], ks[10], cmid)
    s3, b3 = bn(ks[11], ks[12], ks[13], ks[14], cout)

    # Fold BN scales into the conv weights (zero runtime cost).
    w1 = w1_t[:, :, 0, 0] * s1[:, None]                     # (cmid, cin)
    wdw = wdw_t[:, 0].reshape(cmid, kh * kw) * s2[:, None]  # (cmid, kh*kw)
    w3 = w3_t[:, :, 0, 0] * s3[:, None]                     # (cout, cmid)
    return (w1, b1.reshape(cmid, 1), wdw, b2.reshape(cmid, 1),
            w3, b3.reshape(cout, 1))


def reference(x_nchw, params):
    """Pure-JAX NCHW reference of the same forward pass (folded eval-BN)."""
    w1, b1, wdw, b2, w3, b3 = params
    N, Cin, H, W = x_nchw.shape
    cmid = w1.shape[0]
    kh = kw = int(round(wdw.shape[1] ** 0.5))
    hi = jax.lax.Precision.HIGHEST
    h1 = jnp.einsum('mc,nchw->nmhw', w1, x_nchw, precision=hi)
    h1 = jnp.maximum(h1 + b1.reshape(1, cmid, 1, 1), 0.0)
    p = jnp.pad(h1, ((0, 0), (0, 0), (kh // 2, kh // 2), (kw // 2, kw // 2)))
    acc = jnp.zeros_like(h1)
    for i in range(kh):
        for j in range(kw):
            acc = acc + (p[:, :, i:i + H, j:j + W]
                         * wdw[:, i * kw + j].reshape(1, cmid, 1, 1))
    h2 = jnp.maximum(acc + b2.reshape(1, cmid, 1, 1), 0.0)
    y = jnp.einsum('om,nmhw->nohw', w3, h2, precision=hi)
    y = jnp.maximum(y + b3.reshape(1, -1, 1, 1) + x_nchw, 0.0)
    return y


if __name__ == "__main__":
    key = jax.random.PRNGKey(0)
    kx, kp = jax.random.split(key)
    N, C, H, W = 2, 4, 16, 16          # in_planes = out_planes = 4, stride = 1
    x = jax.random.normal(kx, (N, C, H, W), jnp.float32)
    params = make_params(kp, C, C, C)

    out = conv_dw_triplet_res_2d(x, params)
    out = jax.block_until_ready(out)

    ref = reference(x, params)
    assert out.shape == (N, C, H, W)
    err = float(jnp.max(jnp.abs(out - ref)))
    assert jnp.allclose(out, ref, atol=1e-3, rtol=1e-3), f"max abs err = {err}"
    print("KERNEL_OK")
</pallas_src>

<mosaic_0001>
module attributes {stable_mosaic.version = 11 : i64} {
  func.func @_triplet_kernel(%arg0: i32, %arg1: memref<1x4x256xf32, #tpu.memory_space<vmem>>, %arg2: memref<4x4xf32, #tpu.memory_space<vmem>>, %arg3: memref<4x1xf32, #tpu.memory_space<vmem>>, %arg4: memref<4x9xf32, #tpu.memory_space<vmem>>, %arg5: memref<4x1xf32, #tpu.memory_space<vmem>>, %arg6: memref<4x4xf32, #tpu.memory_space<vmem>>, %arg7: memref<4x1xf32, #tpu.memory_space<vmem>>, %arg8: memref<9x256xf32, #tpu.memory_space<vmem>>, %arg9: memref<1x4x256xf32, #tpu.memory_space<vmem>>) attributes {dimension_semantics = [#tpu.dimension_semantics<parallel>], iteration_bounds = array<i64: 2>, scalar_prefetch = 0 : i64, scratch_operands = 0 : i64, tpu.core_type = #tpu.core_type<tc>, window_params = [{transform_indices = @transform_0, window_bounds = array<i64: 1, 4, 256>}, {pipeline_mode = #tpu.pipeline_mode<synchronous>, transform_indices = @transform_1, window_bounds = array<i64: 4, 4>}, {pipeline_mode = #tpu.pipeline_mode<synchronous>, transform_indices = @transform_2, window_bounds = array<i64: 4, 1>}, {pipeline_mode = #tpu.pipeline_mode<synchronous>, transform_indices = @transform_3, window_bounds = array<i64: 4, 9>}, {pipeline_mode = #tpu.pipeline_mode<synchronous>, transform_indices = @transform_4, window_bounds = array<i64: 4, 1>}, {pipeline_mode = #tpu.pipeline_mode<synchronous>, transform_indices = @transform_5, window_bounds = array<i64: 4, 4>}, {pipeline_mode = #tpu.pipeline_mode<synchronous>, transform_indices = @transform_6, window_bounds = array<i64: 4, 1>}, {pipeline_mode = #tpu.pipeline_mode<synchronous>, transform_indices = @transform_7, window_bounds = array<i64: 9, 256>}, {transform_indices = @transform_8, window_bounds = array<i64: 1, 4, 256>}]} {
    %c0 = arith.constant 0 : index
    %c0_0 = arith.constant 0 : index
    %c0_1 = arith.constant 0 : index
    %0 = vector.load %arg1[%c0, %c0_0, %c0_1] : memref<1x4x256xf32, #tpu.memory_space<vmem>>, vector<1x4x256xf32>
    %1 = vector.shape_cast %0 : vector<1x4x256xf32> to vector<4x256xf32>
    %c0_2 = arith.constant 0 : index
    %c0_3 = arith.constant 0 : index
    %2 = vector.load %arg2[%c0_2, %c0_3] : memref<4x4xf32, #tpu.memory_space<vmem>>, vector<4x4xf32>
    %cst = arith.constant dense<0.000000e+00> : vector<4x256xf32>
    %3 = tpu.matmul %2, %1, %cst {dimension_numbers = #tpu.dot_dimension_numbers<[1], [0], [0], [1], [0, 0, 1, 1], [], []>} : vector<4x4xf32>, vector<4x256xf32>, vector<4x256xf32> -> vector<4x256xf32>
    %c0_4 = arith.constant 0 : index
    %c0_5 = arith.constant 0 : index
    %4 = vector.load %arg3[%c0_4, %c0_5] : memref<4x1xf32, #tpu.memory_space<vmem>>, vector<4x1xf32>
    %5 = vector.broadcast %4 : vector<4x1xf32> to vector<4x256xf32>
    %6 = arith.addf %3, %5 : vector<4x256xf32>
    %cst_6 = arith.constant 0.000000e+00 : f32
    %7 = vector.broadcast %cst_6 : f32 to vector<4x256xf32>
    %8 = arith.maximumf %6, %7 : vector<4x256xf32>
    %c0_7 = arith.constant 0 : index
    %c0_8 = arith.constant 0 : index
    %9 = vector.load %arg4[%c0_7, %c0_8] : memref<4x9xf32, #tpu.memory_space<vmem>>, vector<4x9xf32>
    %c0_9 = arith.constant 0 : index
    %c0_10 = arith.constant 0 : index
    %10 = vector.load %arg8[%c0_9, %c0_10] : memref<9x256xf32, #tpu.memory_space<vmem>>, vector<9x256xf32>
    %cst_11 = arith.constant 0.000000e+00 : f32
    %11 = vector.broadcast %cst_11 : f32 to vector<4x256xf32>
    %c17_i32 = arith.constant 17 : i32
    %12 = tpu.dynamic_rotate %8 by %c17_i32 dim 1 : vector<4x256xf32>, i32 -> vector<4x256xf32>
    %13 = vector.extract_strided_slice %9 {offsets = [0, 0], sizes = [4, 1], strides = [1, 1]} : vector<4x9xf32> to vector<4x1xf32>
    %14 = vector.broadcast %13 : vector<4x1xf32> to vector<4x256xf32>
    %15 = arith.mulf %12, %14 : vector<4x256xf32>
    %16 = vector.extract_strided_slice %10 {offsets = [0, 0], sizes = [1, 256], strides = [1, 1]} : vector<9x256xf32> to vector<1x256xf32>
    %17 = vector.broadcast %16 : vector<1x256xf32> to vector<4x256xf32>
    %18 = arith.mulf %15, %17 : vector<4x256xf32>
    %19 = arith.addf %11, %18 : vector<4x256xf32>
    %c16_i32 = arith.constant 16 : i32
    %20 = tpu.dynamic_rotate %8 by %c16_i32 dim 1 : vector<4x256xf32>, i32 -> vector<4x256xf32>
    %21 = vector.extract_strided_slice %9 {offsets = [0, 1], sizes = [4, 1], strides = [1, 1]} : vector<4x9xf32> to vector<4x1xf32>
    %22 = vector.broadcast %21 : vector<4x1xf32> to vector<4x256xf32>
    %23 = arith.mulf %20, %22 : vector<4x256xf32>
    %24 = vector.extract_strided_slice %10 {offsets = [1, 0], sizes = [1, 256], strides = [1, 1]} : vector<9x256xf32> to vector<1x256xf32>
    %25 = vector.broadcast %24 : vector<1x256xf32> to vector<4x256xf32>
    %26 = arith.mulf %23, %25 : vector<4x256xf32>
    %27 = arith.addf %19, %26 : vector<4x256xf32>
    %c15_i32 = arith.constant 15 : i32
    %28 = tpu.dynamic_rotate %8 by %c15_i32 dim 1 : vector<4x256xf32>, i32 -> vector<4x256xf32>
    %29 = vector.extract_strided_slice %9 {offsets = [0, 2], sizes = [4, 1], strides = [1, 1]} : vector<4x9xf32> to vector<4x1xf32>
    %30 = vector.broadcast %29 : vector<4x1xf32> to vector<4x256xf32>
    %31 = arith.mulf %28, %30 : vector<4x256xf32>
    %32 = vector.extract_strided_slice %10 {offsets = [2, 0], sizes = [1, 256], strides = [1, 1]} : vector<9x256xf32> to vector<1x256xf32>
    %33 = vector.broadcast %32 : vector<1x256xf32> to vector<4x256xf32>
    %34 = arith.mulf %31, %33 : vector<4x256xf32>
    %35 = arith.addf %27, %34 : vector<4x256xf32>
    %c1_i32 = arith.constant 1 : i32
    %36 = tpu.dynamic_rotate %8 by %c1_i32 dim 1 : vector<4x256xf32>, i32 -> vector<4x256xf32>
    %37 = vector.extract_strided_slice %9 {offsets = [0, 3], sizes = [4, 1], strides = [1, 1]} : vector<4x9xf32> to vector<4x1xf32>
    %38 = vector.broadcast %37 : vector<4x1xf32> to vector<4x256xf32>
    %39 = arith.mulf %36, %38 : vector<4x256xf32>
    %40 = vector.extract_strided_slice %10 {offsets = [3, 0], sizes = [1, 256], strides = [1, 1]} : vector<9x256xf32> to vector<1x256xf32>
    %41 = vector.broadcast %40 : vector<1x256xf32> to vector<4x256xf32>
    %42 = arith.mulf %39, %41 : vector<4x256xf32>
    %43 = arith.addf %35, %42 : vector<4x256xf32>
    %44 = vector.extract_strided_slice %9 {offsets = [0, 4], sizes = [4, 1], strides = [1, 1]} : vector<4x9xf32> to vector<4x1xf32>
    %45 = vector.broadcast %44 : vector<4x1xf32> to vector<4x256xf32>
    %46 = arith.mulf %8, %45 : vector<4x256xf32>
    %47 = arith.addf %43, %46 : vector<4x256xf32>
    %c255_i32 = arith.constant 255 : i32
    %48 = tpu.dynamic_rotate %8 by %c255_i32 dim 1 : vector<4x256xf32>, i32 -> vector<4x256xf32>
    %49 = vector.extract_strided_slice %9 {offsets = [0, 5], sizes = [4, 1], strides = [1, 1]} : vector<4x9xf32> to vector<4x1xf32>
    %50 = vector.broadcast %49 : vector<4x1xf32> to vector<4x256xf32>
    %51 = arith.mulf %48, %50 : vector<4x256xf32>
    %52 = vector.extract_strided_slice %10 {offsets = [5, 0], sizes = [1, 256], strides = [1, 1]} : vector<9x256xf32> to vector<1x256xf32>
    %53 = vector.broadcast %52 : vector<1x256xf32> to vector<4x256xf32>
    %54 = arith.mulf %51, %53 : vector<4x256xf32>
    %55 = arith.addf %47, %54 : vector<4x256xf32>
    %c241_i32 = arith.constant 241 : i32
    %56 = tpu.dynamic_rotate %8 by %c241_i32 dim 1 : vector<4x256xf32>, i32 -> vector<4x256xf32>
    %57 = vector.extract_strided_slice %9 {offsets = [0, 6], sizes = [4, 1], strides = [1, 1]} : vector<4x9xf32> to vector<4x1xf32>
    %58 = vector.broadcast %57 : vector<4x1xf32> to vector<4x256xf32>
    %59 = arith.mulf %56, %58 : vector<4x256xf32>
    %60 = vector.extract_strided_slice %10 {offsets = [6, 0], sizes = [1, 256], strides = [1, 1]} : vector<9x256xf32> to vector<1x256xf32>
    %61 = vector.broadcast %60 : vector<1x256xf32> to vector<4x256xf32>
    %62 = arith.mulf %59, %61 : vector<4x256xf32>
    %63 = arith.addf %55, %62 : vector<4x256xf32>
    %c240_i32 = arith.constant 240 : i32
    %64 = tpu.dynamic_rotate %8 by %c240_i32 dim 1 : vector<4x256xf32>, i32 -> vector<4x256xf32>
    %65 = vector.extract_strided_slice %9 {offsets = [0, 7], sizes = [4, 1], strides = [1, 1]} : vector<4x9xf32> to vector<4x1xf32>
    %66 = vector.broadcast %65 : vector<4x1xf32> to vector<4x256xf32>
    %67 = arith.mulf %64, %66 : vector<4x256xf32>
    %68 = vector.extract_strided_slice %10 {offsets = [7, 0], sizes = [1, 256], strides = [1, 1]} : vector<9x256xf32> to vector<1x256xf32>
    %69 = vector.broadcast %68 : vector<1x256xf32> to vector<4x256xf32>
    %70 = arith.mulf %67, %69 : vector<4x256xf32>
    %71 = arith.addf %63, %70 : vector<4x256xf32>
    %c239_i32 = arith.constant 239 : i32
    %72 = tpu.dynamic_rotate %8 by %c239_i32 dim 1 : vector<4x256xf32>, i32 -> vector<4x256xf32>
    %73 = vector.extract_strided_slice %9 {offsets = [0, 8], sizes = [4, 1], strides = [1, 1]} : vector<4x9xf32> to vector<4x1xf32>
    %74 = vector.broadcast %73 : vector<4x1xf32> to vector<4x256xf32>
    %75 = arith.mulf %72, %74 : vector<4x256xf32>
    %76 = vector.extract_strided_slice %10 {offsets = [8, 0], sizes = [1, 256], strides = [1, 1]} : vector<9x256xf32> to vector<1x256xf32>
    %77 = vector.broadcast %76 : vector<1x256xf32> to vector<4x256xf32>
    %78 = arith.mulf %75, %77 : vector<4x256xf32>
    %79 = arith.addf %71, %78 : vector<4x256xf32>
    %c0_12 = arith.constant 0 : index
    %c0_13 = arith.constant 0 : index
    %80 = vector.load %arg5[%c0_12, %c0_13] : memref<4x1xf32, #tpu.memory_space<vmem>>, vector<4x1xf32>
    %81 = vector.broadcast %80 : vector<4x1xf32> to vector<4x256xf32>
    %82 = arith.addf %79, %81 : vector<4x256xf32>
    %cst_14 = arith.constant 0.000000e+00 : f32
    %83 = vector.broadcast %cst_14 : f32 to vector<4x256xf32>
    %84 = arith.maximumf %82, %83 : vector<4x256xf32>
    %c0_15 = arith.constant 0 : index
    %c0_16 = arith.constant 0 : index
    %85 = vector.load %arg6[%c0_15, %c0_16] : memref<4x4xf32, #tpu.memory_space<vmem>>, vector<4x4xf32>
    %cst_17 = arith.constant dense<0.000000e+00> : vector<4x256xf32>
    %86 = tpu.matmul %85, %84, %cst_17 {dimension_numbers = #tpu.dot_dimension_numbers<[1], [0], [0], [1], [0, 0, 1, 1], [], []>} : vector<4x4xf32>, vector<4x256xf32>, vector<4x256xf32> -> vector<4x256xf32>
    %c0_18 = arith.constant 0 : index
    %c0_19 = arith.constant 0 : index
    %87 = vector.load %arg7[%c0_18, %c0_19] : memref<4x1xf32, #tpu.memory_space<vmem>>, vector<4x1xf32>
    %88 = vector.broadcast %87 : vector<4x1xf32> to vector<4x256xf32>
    %89 = arith.addf %86, %88 : vector<4x256xf32>
    %90 = arith.addf %89, %1 : vector<4x256xf32>
    %cst_20 = arith.constant 0.000000e+00 : f32
    %91 = vector.broadcast %cst_20 : f32 to vector<4x256xf32>
    %92 = arith.maximumf %90, %91 : vector<4x256xf32>
    %c0_21 = arith.constant 0 : index
    %c0_22 = arith.constant 0 : index
    %c0_23 = arith.constant 0 : index
    %93 = vector.load %arg9[%c0_21, %c0_22, %c0_23] : memref<1x4x256xf32, #tpu.memory_space<vmem>>, vector<1x4x256xf32>
    %94 = vector.shape_cast %93 : vector<1x4x256xf32> to vector<4x256xf32>
    %95 = vector.shape_cast %92 : vector<4x256xf32> to vector<1x4x256xf32>
    tpu.vector_store %arg9[%c0_21, %c0_22, %c0_23], %95 {strides = array<i32>} : memref<1x4x256xf32, #tpu.memory_space<vmem>>, vector<1x4x256xf32>,
    return
  }
  func.func @transform_0(%arg0: i32) -> (i32, i32, i32) {
    %c0_i32 = arith.constant 0 : i32
    %c0_i32_0 = arith.constant 0 : i32
    %c0_i32_1 = arith.constant 0 : i32
    return %arg0, %c0_i32, %c0_i32_0 : i32, i32, i32
  }
  func.func @transform_1(%arg0: i32) -> (i32, i32) {
    %c0_i32 = arith.constant 0 : i32
    %c0_i32_0 = arith.constant 0 : i32
    %c0_i32_1 = arith.constant 0 : i32
    return %c0_i32, %c0_i32_0 : i32, i32
  }
  func.func @transform_2(%arg0: i32) -> (i32, i32) {
    %c0_i32 = arith.constant 0 : i32
    %c0_i32_0 = arith.constant 0 : i32
    %c0_i32_1 = arith.constant 0 : i32
    return %c0_i32, %c0_i32_0 : i32, i32
  }
  func.func @transform_3(%arg0: i32) -> (i32, i32) {
    %c0_i32 = arith.constant 0 : i32
    %c0_i32_0 = arith.constant 0 : i32
    %c0_i32_1 = arith.constant 0 : i32
    return %c0_i32, %c0_i32_0 : i32, i32
  }
  func.func @transform_4(%arg0: i32) -> (i32, i32) {
    %c0_i32 = arith.constant 0 : i32
    %c0_i32_0 = arith.constant 0 : i32
    %c0_i32_1 = arith.constant 0 : i32
    return %c0_i32, %c0_i32_0 : i32, i32
  }
  func.func @transform_5(%arg0: i32) -> (i32, i32) {
    %c0_i32 = arith.constant 0 : i32
    %c0_i32_0 = arith.constant 0 : i32
    %c0_i32_1 = arith.constant 0 : i32
    return %c0_i32, %c0_i32_0 : i32, i32
  }
  func.func @transform_6(%arg0: i32) -> (i32, i32) {
    %c0_i32 = arith.constant 0 : i32
    %c0_i32_0 = arith.constant 0 : i32
    %c0_i32_1 = arith.constant 0 : i32
    return %c0_i32, %c0_i32_0 : i32, i32
  }
  func.func @transform_7(%arg0: i32) -> (i32, i32) {
    %c0_i32 = arith.constant 0 : i32
    %c0_i32_0 = arith.constant 0 : i32
    %c0_i32_1 = arith.constant 0 : i32
    return %c0_i32, %c0_i32_0 : i32, i32
  }
  func.func @transform_8(%arg0: i32) -> (i32, i32, i32) {
    %c0_i32 = arith.constant 0 : i32
    %c0_i32_0 = arith.constant 0 : i32
    %c0_i32_1 = arith.constant 0 : i32
    return %arg0, %c0_i32, %c0_i32_0 : i32, i32, i32
  }
}

</mosaic_0001>

<llo_original>
// kernel: tpu_custom_call.1
$region0: #{tpu_custom_call.1}
  #allocation0 [shape = 'u32[]', space=smem, size = 0x4, offset = 0x4, fixed_abs, tag = 'smem constant byte address 0x4 - core index']
  #allocation1 [shape = 'u32[144,128]{1,0:T(1,128)}', space=vmem, size = 0x12000, scoped, tag = 'internal scratch']
  %s0 = inlined_call_operand.hbm [shape: f32[2,4,256], index: 0, kind: input, shape index: {}]
  %s1 = inlined_call_operand.vmem [shape: f32[4,4], index: 1, kind: input, shape index: {}]
  %s2 = inlined_call_operand.vmem [shape: f32[4,1], index: 2, kind: input, shape index: {}]
  %s3 = inlined_call_operand.vmem [shape: f32[4,9], index: 3, kind: input, shape index: {}]
  %s4 = inlined_call_operand.vmem [shape: f32[4,1], index: 4, kind: input, shape index: {}]
  %s5 = inlined_call_operand.hbm [shape: f32[4,4], index: 5, kind: input, shape index: {}]
  %s6 = inlined_call_operand.vmem [shape: f32[4,1], index: 6, kind: input, shape index: {}]
  %s7 = inlined_call_operand.vmem [shape: f32[9,256], index: 7, kind: input, shape index: {}]
  %s8 = inlined_call_operand.hbm [shape: f32[2,4,256], index: 8, kind: output, shape index: {}]
  %s9 = sld [smem:[#allocation0]]
  $region73: #{tpu_custom_call.1} parent=0
    _
  %s11 = ssub.s32 1, %s9
  %s12 = scalar_select 0, %s11, %s9
  $region1: #{tpu_custom_call.1} parent=0
    #allocation2 [shape = 'u8[8192]{0}', space=vmem, size = 0x2000, scoped, tag = 'input window, operand 0']
    #allocation3 [shape = 's32[2]{0}', space=sflag, size = 0x8, scoped, tag = 'scoped memory for tpu_custom_call.1']
    #allocation4 [shape = 's32[2]{0}', space=sflag, size = 0x8, scoped, tag = 'scoped memory for tpu_custom_call.1']
    #allocation5 [shape = 'u8[2048]{0}', space=vmem, size = 0x800, scoped, tag = 'input window, operand 5, single buffered']
    #allocation6 [shape = 's32[1]{0}', space=sflag, size = 0x4, scoped, tag = 'scoped memory for tpu_custom_call.1']
    #allocation7 [shape = 'u8[8192]{0}', space=vmem, size = 0x2000, scoped, tag = 'output window, operand 0']
    %13 = vsyncpa [#allocation3], 0
    %s14 = scalar_lea.sflag [#allocation3], 1
    %15 = vsyncpa %s14, 0
    %16 = vsyncpa [#allocation6], 0
    %17 = vsyncpa [#allocation4], 0
    %s18 = scalar_lea.sflag [#allocation4], 1
    %19 = vsyncpa %s18, 0
    loop: start=0, step=1, limit=4
    $region2: #{tpu_custom_call.1} parent=1 // loop_pre_header
      _
    $region3: #{tpu_custom_call.1} parent=1 // loop_header
      %s21 = sphi 0, %s25
      %p22 = scmp.ge.s32.totalorder %s21, 4
      %s31 = sphi 0, %s33
      %s34 = sphi 0, %s31
      %s35 = sphi 0, %s34
      %s51 = sphi 0, %s35
      %s55 = sphi 0, %s55
      %s57 = sphi 0, %s55
      %s58 = sphi 0, %s57
      %s72 = sphi 0, %s58
      %s76 = sphi 0, %s76
      %s78 = sphi 0, %s76
      %s79 = sphi 0, %s78
      %s93 = sphi 0, %s79
      %s97 = sphi 0, %s97
      %s99 = sphi 0, %s97
      %s100 = sphi 0, %s99
      %s114 = sphi 0, %s100
      %s118 = sphi 0, %s118
      %s120 = sphi 0, %s118
      %s121 = sphi 0, %s120
      %s135 = sphi 0, %s121
      %s139 = sphi 0, %s139
      %s141 = sphi 0, %s139
      %s142 = sphi 0, %s141
      %s156 = sphi 0, %s142
      %s160 = sphi 0, %s160
      %s162 = sphi 0, %s160
      %s163 = sphi 0, %s162
      %s177 = sphi 0, %s163
      %s181 = sphi 0, %s181
      %s183 = sphi 0, %s181
      %s184 = sphi 0, %s183
      %s198 = sphi 0, %s184
      %s204 = sphi 0, %s206
      %s207 = sphi 0, %s204
      %s208 = sphi 0, %s207
      %s224 = sphi 0, %s208
    $region4: #{tpu_custom_call.1} parent=1 // loop_header_branch
      %24 = sbr.rel (%p22) target = $region8
    $region5: #{tpu_custom_call.1} parent=1 // loop_body
      %s26 = ssub.s32 %s21, 1
      %s27 = ssub.s32 %s21, 2
      %s28 = sadd.s32 %s21, 1
      %s29 = ssub.s32 %s21, %s28
      %p30 = scmp.eq.s32.totalorder %s29, 0
      %s32 = sadd.s32 %s31, 1
      %s33 = scalar_select %p30, %s31, %s32
      %p36 = pneg %p30
      %p37 = scmp.eq.s32.totalorder %s21, 1
      %p38 = por %p36, %p37
      %p39 = scmp.ne.s32.totalorder %s31, %s34
      %p40 = scmp.eq.s32.totalorder %s21, 0
      %p41 = por %p39, %p40
      %p42 = scmp.ne.s32.totalorder %s31, %s34
      %p43 = scmp.eq.s32.totalorder %s26, 1
      %p44 = por %p42, %p43
      %p45 = scmp.ne.s32.totalorder %s34, %s35
      %p46 = scmp.eq.s32.totalorder %s26, 0
      %p47 = por %p45, %p46
      %p48 = scmp.ne.s32.totalorder %s34, %s35
      %p49 = scmp.eq.s32.totalorder %s27, 1
      %p50 = por %p48, %p49
      %p52 = scmp.ne.s32.totalorder %s35, %s51
      %p53 = scmp.eq.s32.totalorder %s27, 0
      %p54 = por %p52, %p53
      %s56 = sadd.s32 %s55, 1
      %p59 = scmp.eq.s32.totalorder %s21, 1
      %p60 = scmp.ne.s32.totalorder %s55, %s57
      %p61 = scmp.eq.s32.totalorder %s21, 0
      %p62 = por %p60, %p61
      %p63 = scmp.ne.s32.totalorder %s55, %s57
      %p64 = scmp.eq.s32.totalorder %s26, 1
      %p65 = por %p63, %p64
      %p66 = scmp.ne.s32.totalorder %s57, %s58
      %p67 = scmp.eq.s32.totalorder %s26, 0
      %p68 = por %p66, %p67
      %p69 = scmp.ne.s32.totalorder %s57, %s58
      %p70 = scmp.eq.s32.totalorder %s27, 1
      %p71 = por %p69, %p70
      %p73 = scmp.ne.s32.totalorder %s58, %s72
      %p74 = scmp.eq.s32.totalorder %s27, 0
      %p75 = por %p73, %p74
      %s77 = sadd.s32 %s76, 1
      %p80 = scmp.eq.s32.totalorder %s21, 1
      %p81 = scmp.ne.s32.totalorder %s76, %s78
      %p82 = scmp.eq.s32.totalorder %s21, 0
      %p83 = por %p81, %p82
      %p84 = scmp.ne.s32.totalorder %s76, %s78
      %p85 = scmp.eq.s32.totalorder %s26, 1
      %p86 = por %p84, %p85
      %p87 = scmp.ne.s32.totalorder %s78, %s79
      %p88 = scmp.eq.s32.totalorder %s26, 0
      %p89 = por %p87, %p88
      %p90 = scmp.ne.s32.totalorder %s78, %s79
      %p91 = scmp.eq.s32.totalorder %s27, 1
      %p92 = por %p90, %p91
      %p94 = scmp.ne.s32.totalorder %s79, %s93
      %p95 = scmp.eq.s32.totalorder %s27, 0
      %p96 = por %p94, %p95
      %s98 = sadd.s32 %s97, 1
      %p101 = scmp.eq.s32.totalorder %s21, 1
      %p102 = scmp.ne.s32.totalorder %s97, %s99
      %p103 = scmp.eq.s32.totalorder %s21, 0
      %p104 = por %p102, %p103
      %p105 = scmp.ne.s32.totalorder %s97, %s99
      %p106 = scmp.eq.s32.totalorder %s26, 1
      %p107 = por %p105, %p106
      %p108 = scmp.ne.s32.totalorder %s99, %s100
      %p109 = scmp.eq.s32.totalorder %s26, 0
      %p110 = por %p108, %p109
      %p111 = scmp.ne.s32.totalorder %s99, %s100
      %p112 = scmp.eq.s32.totalorder %s27, 1
      %p113 = por %p111, %p112
      %p115 = scmp.ne.s32.totalorder %s100, %s114
      %p116 = scmp.eq.s32.totalorder %s27, 0
      %p117 = por %p115, %p116
      %s119 = sadd.s32 %s118, 1
      %p122 = scmp.eq.s32.totalorder %s21, 1
      %p123 = scmp.ne.s32.totalorder %s118, %s120
      %p124 = scmp.eq.s32.totalorder %s21, 0
      %p125 = por %p123, %p124
      %p126 = scmp.ne.s32.totalorder %s118, %s120
      %p127 = scmp.eq.s32.totalorder %s26, 1
      %p128 = por %p126, %p127
      %p129 = scmp.ne.s32.totalorder %s120, %s121
      %p130 = scmp.eq.s32.totalorder %s26, 0
      %p131 = por %p129, %p130
      %p132 = scmp.ne.s32.totalorder %s120, %s121
      %p133 = scmp.eq.s32.totalorder %s27, 1
      %p134 = por %p132, %p133
      %p136 = scmp.ne.s32.totalorder %s121, %s135
      %p137 = scmp.eq.s32.totalorder %s27, 0
      %p138 = por %p136, %p137
      %s140 = sadd.s32 %s139, 1
      %p143 = scmp.eq.s32.totalorder %s21, 1
      %p144 = scmp.ne.s32.totalorder %s139, %s141
      %p145 = scmp.eq.s32.totalorder %s21, 0
      %p146 = por %p144, %p145
      %p147 = scmp.ne.s32.totalorder %s139, %s141
      %p148 = scmp.eq.s32.totalorder %s26, 1
      %p149 = por %p147, %p148
      %p150 = scmp.ne.s32.totalorder %s141, %s142
      %p151 = scmp.eq.s32.totalorder %s26, 0
      %p152 = por %p150, %p151
      %p153 = scmp.ne.s32.totalorder %s141, %s142
      %p154 = scmp.eq.s32.totalorder %s27, 1
      %p155 = por %p153, %p154
      %p157 = scmp.ne.s32.totalorder %s142, %s156
      %p158 = scmp.eq.s32.totalorder %s27, 0
      %p159 = por %p157, %p158
      %s161 = sadd.s32 %s160, 1
      %p164 = scmp.eq.s32.totalorder %s21, 1
      %p165 = scmp.ne.s32.totalorder %s160, %s162
      %p166 = scmp.eq.s32.totalorder %s21, 0
      %p167 = por %p165, %p166
      %p168 = scmp.ne.s32.totalorder %s160, %s162
      %p169 = scmp.eq.s32.totalorder %s26, 1
      %p170 = por %p168, %p169
      %p171 = scmp.ne.s32.totalorder %s162, %s163
      %p172 = scmp.eq.s32.totalorder %s26, 0
      %p173 = por %p171, %p172
      %p174 = scmp.ne.s32.totalorder %s162, %s163
      %p175 = scmp.eq.s32.totalorder %s27, 1
      %p176 = por %p174, %p175
      %p178 = scmp.ne.s32.totalorder %s163, %s177
      %p179 = scmp.eq.s32.totalorder %s27, 0
      %p180 = por %p178, %p179
      %s182 = sadd.s32 %s181, 1
      %p185 = scmp.eq.s32.totalorder %s21, 1
      %p186 = scmp.ne.s32.totalorder %s181, %s183
      %p187 = scmp.eq.s32.totalorder %s21, 0
      %p188 = por %p186, %p187
      %p189 = scmp.ne.s32.totalorder %s181, %s183
      %p190 = scmp.eq.s32.totalorder %s26, 1
      %p191 = por %p189, %p190
      %p192 = scmp.ne.s32.totalorder %s183, %s184
      %p193 = scmp.eq.s32.totalorder %s26, 0
      %p194 = por %p192, %p193
      %p195 = scmp.ne.s32.totalorder %s183, %s184
      %p196 = scmp.eq.s32.totalorder %s27, 1
      %p197 = por %p195, %p196
      %p199 = scmp.ne.s32.totalorder %s184, %s198
      %p200 = scmp.eq.s32.totalorder %s27, 0
      %p201 = por %p199, %p200
      %s202 = ssub.s32 %s21, %s28
      %p203 = scmp.eq.s32.totalorder %s202, 0
      %s205 = sadd.s32 %s204, 1
      %s206 = scalar_select %p203, %s204, %s205
      %p209 = pneg %p203
      %p210 = scmp.eq.s32.totalorder %s21, 1
      %p211 = por %p209, %p210
      %p212 = scmp.ne.s32.totalorder %s204, %s207
      %p213 = scmp.eq.s32.totalorder %s21, 0
      %p214 = por %p212, %p213
      %p215 = scmp.ne.s32.totalorder %s204, %s207
      %p216 = scmp.eq.s32.totalorder %s26, 1
      %p217 = por %p215, %p216
      %p218 = scmp.ne.s32.totalorder %s207, %s208
      %p219 = scmp.eq.s32.totalorder %s26, 0
      %p220 = por %p218, %p219
      %p221 = scmp.ne.s32.totalorder %s207, %s208
      %p222 = scmp.eq.s32.totalorder %s27, 1
      %p223 = por %p221, %p222
      %p225 = scmp.ne.s32.totalorder %s208, %s224
      %p226 = scmp.eq.s32.totalorder %s27, 0
      %p227 = por %p225, %p226
      %p228 = scmp.le.s32.totalorder 1, %s21
      %p229 = scmp.lt.s32.totalorder %s21, 3
      %p230 = pnand %p228, %p229
      %p231 = pneg %p230
      // Predicated region
      $region9: #{tpu_custom_call.1} parent=5 // pred_check
        _
      $region10: #{tpu_custom_call.1} parent=5 // pred_check_branch
        %233 = sbr.rel (%p230) target = $region12
      $region11: #{tpu_custom_call.1} parent=5 // pred_region
        %s234 = ssub.s32 %s21, 1
        // Predicated region
        $region13: #{tpu_custom_call.1} parent=11 // pred_check
          %p235 = pneg %p68
        $region14: #{tpu_custom_call.1} parent=11 // pred_check_branch
          %237 = sbr.rel (%p235) target = $region16
        $region15: #{tpu_custom_call.1} parent=11 // pred_region
          _
        $region16: #{tpu_custom_call.1} parent=11 // pred_fallthru
          _
        // Predicated region
        $region17: #{tpu_custom_call.1} parent=11 // pred_check
          %p238 = pneg %p89
        $region18: #{tpu_custom_call.1} parent=11 // pred_check_branch
          %240 = sbr.rel (%p238) target = $region20
        $region19: #{tpu_custom_call.1} parent=11 // pred_region
          _
        $region20: #{tpu_custom_call.1} parent=11 // pred_fallthru
          _
        // Predicated region
        $region21: #{tpu_custom_call.1} parent=11 // pred_check
          %p241 = pneg %p110
        $region22: #{tpu_custom_call.1} parent=11 // pred_check_branch
          %243 = sbr.rel (%p241) target = $region24
        $region23: #{tpu_custom_call.1} parent=11 // pred_region
          _
        $region24: #{tpu_custom_call.1} parent=11 // pred_fallthru
          _
        // Predicated region
        $region25: #{tpu_custom_call.1} parent=11 // pred_check
          %p244 = pneg %p131
        $region26: #{tpu_custom_call.1} parent=11 // pred_check_branch
          %246 = sbr.rel (%p244) target = $region28
        $region27: #{tpu_custom_call.1} parent=11 // pred_region
          _
        $region28: #{tpu_custom_call.1} parent=11 // pred_fallthru
          _
        // Predicated region
        $region29: #{tpu_custom_call.1} parent=11 // pred_check
          %p247 = pneg %p152
        $region30: #{tpu_custom_call.1} parent=11 // pred_check_branch
          %249 = sbr.rel (%p247) target = $region32
        $region31: #{tpu_custom_call.1} parent=11 // pred_region
          %s251 = ssub.s32 64, 64
          %252 = vsyncadd [#allocation6], %s251
          %s254 = sshll.u32 [#allocation5], 4
          %s255 = int_to_ptr.vmem [resolvable:$true] %s254
          %257 = dma.hbm_to_vmem [thread:$0]  %s5, 64, %s255, [#allocation6]
        $region32: #{tpu_custom_call.1} parent=11 // pred_fallthru
          _
        // Predicated region
        $region33: #{tpu_custom_call.1} parent=11 // pred_check
          %p258 = pneg %p173
        $region34: #{tpu_custom_call.1} parent=11 // pred_check_branch
          %260 = sbr.rel (%p258) target = $region36
        $region35: #{tpu_custom_call.1} parent=11 // pred_region
          _
        $region36: #{tpu_custom_call.1} parent=11 // pred_fallthru
          _
        // Predicated region
        $region37: #{tpu_custom_call.1} parent=11 // pred_check
          %p261 = pneg %p194
        $region38: #{tpu_custom_call.1} parent=11 // pred_check_branch
          %263 = sbr.rel (%p261) target = $region40
        $region39: #{tpu_custom_call.1} parent=11 // pred_region
          _
        $region40: #{tpu_custom_call.1} parent=11 // pred_fallthru
          _
      $region12: #{tpu_custom_call.1} parent=5 // pred_fallthru
        _
      %p264 = scmp.lt.s32.totalorder %s21, 2
      // Predicated region
      $region41: #{tpu_custom_call.1} parent=5 // pred_check
        %p265 = pneg %p264
      $region42: #{tpu_custom_call.1} parent=5 // pred_check_branch
        %267 = sbr.rel (%p265) target = $region44
      $region43: #{tpu_custom_call.1} parent=5 // pred_region
        // Predicated region
        $region45: #{tpu_custom_call.1} parent=43 // pred_check
          %p268 = pneg %p41
        $region46: #{tpu_custom_call.1} parent=43 // pred_check_branch
          %270 = sbr.rel (%p268) target = $region48
        $region47: #{tpu_custom_call.1} parent=43 // pred_region
          %s271 = sand.u32 %s31, 1
          %s272 = scalar_lea.sflag [#allocation3], %s271
          %s273 = sand.u32 %s31, 1
          %s274 = smul.addr %s273, 8
          %s275 = scalar_lea.vmem [#allocation2], %s274
          %s277 = ssub.s32 128, 128
          %278 = vsyncadd %s272, %s277
          %s279 = smul.addr %s21, 2
          %s280 = smul.addr %s279, 64
          %s281 = scalar_lea.hbm %s0, %s280
          %s283 = sshll.u32 %s275, 4
          %s284 = int_to_ptr.vmem [resolvable:$true] %s283
          %286 = dma.hbm_to_vmem [thread:$0]  %s281, 128, %s284, %s272
        $region48: #{tpu_custom_call.1} parent=43 // pred_fallthru
          _
      $region44: #{tpu_custom_call.1} parent=5 // pred_fallthru
        _
      %p287 = scmp.le.s32.totalorder 1, %s21
      %p288 = scmp.lt.s32.totalorder %s21, 3
      %p289 = pnand %p287, %p288
      %p290 = pneg %p289
      // Predicated region
      $region49: #{tpu_custom_call.1} parent=5 // pred_check
        _
      $region50: #{tpu_custom_call.1} parent=5 // pred_check_branch
        %292 = sbr.rel (%p289) target = $region52
      $region51: #{tpu_custom_call.1} parent=5 // pred_region
        %s293 = ssub.s32 %s21, 1
        %s294 = sand.u32 %s34, 1
        %s295 = scalar_lea.sflag [#allocation3], %s294
        %s296 = sand.u32 %s34, 1
        %s297 = smul.addr %s296, 8
        %s298 = scalar_lea.vmem [#allocation2], %s297
        // Predicated region
        $region53: #{tpu_custom_call.1} parent=51 // pred_check
          %p299 = pneg %p47
        $region54: #{tpu_custom_call.1} parent=51 // pred_check_branch
          %301 = sbr.rel (%p299) target = $region56
        $region55: #{tpu_custom_call.1} parent=51 // pred_region
          %302 = dma.done %s295, 128
        $region56: #{tpu_custom_call.1} parent=51 // pred_fallthru
          _
        // Predicated region
        $region57: #{tpu_custom_call.1} parent=51 // pred_check
          %p303 = pneg %p152
        $region58: #{tpu_custom_call.1} parent=51 // pred_check_branch
          %305 = sbr.rel (%p303) target = $region60
        $region59: #{tpu_custom_call.1} parent=51 // pred_region
          %306 = dma.done [#allocation6], 64
        $region60: #{tpu_custom_call.1} parent=51 // pred_fallthru
          _
        %s307 = sand.u32 %s34, 1
        %s308 = scalar_lea.sflag [#allocation3], %s307
        %s309 = sand.u32 %s34, 1
        %s310 = smul.addr %s309, 8
        %s311 = scalar_lea.vmem [#allocation2], %s310
        %p312 = pneg %p47
        %p313 = pneg %p44
        %p314 = pneg %p68
        %p315 = pneg %p65
        %p316 = pneg %p89
        %p317 = pneg %p86
        %p318 = pneg %p110
        %p319 = pneg %p107
        %p320 = pneg %p131
        %p321 = pneg %p128
        %p322 = pneg %p152
        %p323 = pneg %p149
        %p324 = pneg %p173
        %p325 = pneg %p170
        %p326 = pneg %p194
        %p327 = pneg %p191
        %p328 = pneg %p220
        %p329 = pneg %p217
        %s330 = sand.u32 %s207, 1
        %s331 = scalar_lea.sflag [#allocation4], %s330
        %s332 = sand.u32 %s207, 1
        %s333 = smul.addr %s332, 8
        %s334 = scalar_lea.vmem [#allocation7], %s333
        %v335 = vld [vmem:[%s298] sm:$0xff]
        %v336 = vld [vmem:[%s1] sm:$0xf]
        %v337 = vld [vmem:[%s2] sm:$0xf]
        %339 = vset.pattern.permute.xlu0 0
        %340 = vperm.xlu0 %339, %v337
        %v341 = vpop.permute.xlu0 %340
        %v344 = vcombine.high %v335, %v335
        %vm345 = vcmask 31744
        %v347 = vsel %vm345, %v336, 0
        %vm349 = vcmask 1043456
        %v350 = vsel %vm349, %v335, 0
        %v352 = vsel %vm349, %v344, 0
        %354 = vmatprep.subr.mxu0 %v352
        %355 = vmatpush1.msra.mxu0 %v350
        %356 = vmatprep.subr.mxu0 0.0
        %357 = vmatpush1.msra.mxu0 0.0
        %358 = vmatprep.subr.mxu0 0.0
        %359 = vmatpush1.msra.mxu0 0.0
        %360 = vmatprep.subr.mxu0 0.0
        %361 = vmatpush1.msra.mxu0 0.0
        %362 = vmatprep.subr.mxu0 0.0
        %363 = vmatpush1.msra.mxu0 0.0
        %364 = vmatprep.subr.mxu0 0.0
        %365 = vmatpush1.msra.mxu0 0.0
        %366 = vmatprep.subr.mxu0 0.0
        %367 = vmatpush1.msra.mxu0 0.0
        %368 = vmatprep.subr.mxu0 0.0
        %369 = vmatpush1.msra.mxu0 0.0
        %370 = vmatprep.subr.mxu0 0.0
        %371 = vmatpush1.msra.mxu0 0.0
        %372 = vmatprep.subr.mxu0 0.0
        %373 = vmatpush1.msra.mxu0 0.0
        %374 = vmatprep.subr.mxu0 0.0
        %375 = vmatpush1.msra.mxu0 0.0
        %376 = vmatprep.subr.mxu0 0.0
        %377 = vmatpush1.msra.mxu0 0.0
        %378 = vmatprep.subr.mxu0 0.0
        %379 = vmatpush1.msra.mxu0 0.0
        %380 = vmatprep.subr.mxu0 0.0
        %381 = vmatpush1.msra.mxu0 0.0
        %382 = vmatprep.subr.mxu0 0.0
        %383 = vmatpush1.msra.mxu0 0.0
        %384 = vmatprep.subr.mxu0 0.0
        %385 = vmatpush1.msra.mxu0 0.0
        %386 = vmatprep.subr.mxu0 0.0
        %387 = vmatpush1.msra.mxu0 0.0
        %388 = vmatprep.subr.mxu0 0.0
        %389 = vmatpush1.msra.mxu0 0.0
        %390 = vmatprep.subr.mxu0 0.0
        %391 = vmatpush1.msra.mxu0 0.0
        %392 = vmatprep.subr.mxu0 0.0
        %393 = vmatpush1.msra.mxu0 0.0
        %394 = vmatprep.subr.mxu0 0.0
        %395 = vmatpush1.msra.mxu0 0.0
        %396 = vmatprep.subr.mxu0 0.0
        %397 = vmatpush1.msra.mxu0 0.0
        %398 = vmatprep.subr.mxu0 0.0
        %399 = vmatpush1.msra.mxu0 0.0
        %400 = vmatprep.subr.mxu0 0.0
        %401 = vmatpush1.msra.mxu0 0.0
        %402 = vmatprep.subr.mxu0 0.0
        %403 = vmatpush1.msra.mxu0 0.0
        %404 = vmatprep.subr.mxu0 0.0
        %405 = vmatpush1.msra.mxu0 0.0
        %406 = vmatprep.subr.mxu0 0.0
        %407 = vmatpush1.msra.mxu0 0.0
        %408 = vmatprep.subr.mxu0 0.0
        %409 = vmatpush1.msra.mxu0 0.0
        %410 = vmatprep.subr.mxu0 0.0
        %411 = vmatpush1.msra.mxu0 0.0
        %412 = vmatprep.subr.mxu0 0.0
        %413 = vmatpush1.msra.mxu0 0.0
        %414 = vmatprep.subr.mxu0 0.0
        %415 = vmatpush1.msra.mxu0 0.0
        %416 = vmatprep.subr.mxu0 0.0
        %417 = vmatpush1.msra.mxu0 0.0
        %418 = vmatprep.mubr.f32.mxu0 0.0
        %419 = vmatmul.mubr.f32.gmra.mrb[0].mxu0 %v347
        %v420 = vpop.f32.mrb[0].mxu0
        %v421 = vadd.f32 %v341, %v420
        %v422 = vpop.f32.mrb[0].mxu0
        %v423 = vadd.f32 %v341, %v422
        %424 = vdwg.mxu0
        %v425 = vmax.f32 %v421, 0.0
        %v426 = vmax.f32 %v423, 0.0
        %v427 = vld [vmem:[%s3] sm:$0xf]
        %v428 = vld [vmem:[%s7] sm:$0xff]
        %v429 = vld [vmem:[%s7 + $0x8] sm:$0xff]
        %v430 = vld [vmem:[%s7 + $0x10] sm:$0x1]
        %v431 = vld [vmem:[%s7 + $0x18] sm:$0x1]
        %432 = vrot.lane.b32.xlu0 %v425, 17
        %v433 = vpop.permute.xlu0 %432
        %434 = vrot.lane.b32.xlu0 %v426, 17
        %v435 = vpop.permute.xlu0 %434
        %v436 = vlaneseq
        %v437 = vand.u32 %v436, 127
        %vm438 = vcmp.lt.s32.totalorder %v437, 17
        %v439 = vsel %vm438, %v433, %v435
        %v440 = vsel %vm438, %v435, %v433
        %442 = vset.pattern.permute.xlu0 0
        %443 = vperm.xlu0 %442, %v427
        %v444 = vpop.permute.xlu0 %443
        %v446 = vmul.f32 %v440, %v444
        %v447 = vmul.f32 %v439, %v444
        %v448 = vlaneseq
        %v449 = vshrl.u32 %v448, 7
        %v450 = vsub.s32 0, %v449
        %v451 = vrot.slane %v428, %v450
        %v452 = vlaneseq
        %v453 = vshrl.u32 %v452, 7
        %v454 = vsub.s32 0, %v453
        %v455 = vrot.slane %v429, %v454
        %v456 = vmul.f32 %v446, %v451
        %v457 = vmul.f32 %v447, %v455
        %v458 = vadd.f32 %v456, 0.0
        %v459 = vadd.f32 %v457, 0.0
        %460 = vrot.lane.b32.xlu0 %v425, 16
        %v461 = vpop.permute.xlu0 %460
        %462 = vrot.lane.b32.xlu0 %v426, 16
        %v463 = vpop.permute.xlu0 %462
        %vm464 = vcmp.lt.s32.totalorder %v437, 16
        %v465 = vsel %vm464, %v461, %v463
        %v466 = vsel %vm464, %v463, %v461
        %467 = vset.pattern.permute.xlu0 1
        %468 = vperm.xlu0 %467, %v427
        %v469 = vpop.permute.xlu0 %468
        %v471 = vmul.f32 %v466, %v469
        %v472 = vmul.f32 %v465, %v469
        %v473 = vlaneseq
        %v474 = vshrl.u32 %v473, 7
        %v475 = vsub.s32 1, %v474
        %v476 = vrot.slane %v428, %v475
        %v477 = vlaneseq
        %v478 = vshrl.u32 %v477, 7
        %v479 = vsub.s32 1, %v478
        %v480 = vrot.slane %v429, %v479
        %v481 = vmul.f32 %v471, %v476
        %v482 = vmul.f32 %v472, %v480
        %v483 = vadd.f32 %v458, %v481
        %v484 = vadd.f32 %v459, %v482
        %485 = vrot.lane.b32.xlu0 %v425, 15
        %v486 = vpop.permute.xlu0 %485
        %487 = vrot.lane.b32.xlu0 %v426, 15
        %v488 = vpop.permute.xlu0 %487
        %vm489 = vcmp.lt.s32.totalorder %v437, 15
        %v490 = vsel %vm489, %v486, %v488
        %v491 = vsel %vm489, %v488, %v486
        %492 = vset.pattern.permute.xlu0 2
        %493 = vperm.xlu0 %492, %v427
        %v494 = vpop.permute.xlu0 %493
        %v496 = vmul.f32 %v491, %v494
        %v497 = vmul.f32 %v490, %v494
        %v498 = vlaneseq
        %v499 = vshrl.u32 %v498, 7
        %v500 = vsub.s32 2, %v499
        %v501 = vrot.slane %v428, %v500
        %v502 = vlaneseq
        %v503 = vshrl.u32 %v502, 7
        %v504 = vsub.s32 2, %v503
        %v505 = vrot.slane %v429, %v504
        %v506 = vmul.f32 %v496, %v501
        %v507 = vmul.f32 %v497, %v505
        %v508 = vadd.f32 %v483, %v506
        %v509 = vadd.f32 %v484, %v507
        %510 = vrot.lane.b32.xlu0 %v425, 1
        %v511 = vpop.permute.xlu0 %510
        %512 = vrot.lane.b32.xlu0 %v426, 1
        %v513 = vpop.permute.xlu0 %512
        %vm514 = vcmp.lt.s32.totalorder %v437, 1
        %v515 = vsel %vm514, %v511, %v513
        %v516 = vsel %vm514, %v513, %v511
        %517 = vset.pattern.permute.xlu0 3
        %518 = vperm.xlu0 %517, %v427
        %v519 = vpop.permute.xlu0 %518
        %v521 = vmul.f32 %v516, %v519
        %v522 = vmul.f32 %v515, %v519
        %v523 = vlaneseq
        %v524 = vshrl.u32 %v523, 7
        %v525 = vsub.s32 3, %v524
        %v526 = vrot.slane %v428, %v525
        %v527 = vlaneseq
        %v528 = vshrl.u32 %v527, 7
        %v529 = vsub.s32 3, %v528
        %v530 = vrot.slane %v429, %v529
        %v531 = vmul.f32 %v521, %v526
        %v532 = vmul.f32 %v522, %v530
        %v533 = vadd.f32 %v508, %v531
        %v534 = vadd.f32 %v509, %v532
        %535 = vset.pattern.permute.xlu0 4
        %536 = vperm.xlu0 %535, %v427
        %v537 = vpop.permute.xlu0 %536
        %v539 = vmul.f32 %v425, %v537
        %v540 = vmul.f32 %v426, %v537
        %v541 = vadd.f32 %v533, %v539
        %v542 = vadd.f32 %v534, %v540
        %543 = vrot.lane.b32.xlu0 %v425, 127
        %v544 = vpop.permute.xlu0 %543
        %545 = vrot.lane.b32.xlu0 %v426, 127
        %v546 = vpop.permute.xlu0 %545
        %vm547 = vcmp.lt.s32.totalorder %v437, 127
        %v548 = vsel %vm547, %v544, %v546
        %v549 = vsel %vm547, %v546, %v544
        %550 = vset.pattern.permute.xlu0 5
        %551 = vperm.xlu0 %550, %v427
        %v552 = vpop.permute.xlu0 %551
        %v554 = vmul.f32 %v548, %v552
        %v555 = vmul.f32 %v549, %v552
        %v556 = vlaneseq
        %v557 = vshrl.u32 %v556, 7
        %v558 = vsub.s32 5, %v557
        %v559 = vrot.slane %v428, %v558
        %v560 = vlaneseq
        %v561 = vshrl.u32 %v560, 7
        %v562 = vsub.s32 5, %v561
        %v563 = vrot.slane %v429, %v562
        %v564 = vmul.f32 %v554, %v559
        %v565 = vmul.f32 %v555, %v563
        %v566 = vadd.f32 %v541, %v564
        %v567 = vadd.f32 %v542, %v565
        %568 = vrot.lane.b32.xlu0 %v425, 113
        %v569 = vpop.permute.xlu0 %568
        %570 = vrot.lane.b32.xlu0 %v426, 113
        %v571 = vpop.permute.xlu0 %570
        %vm572 = vcmp.lt.s32.totalorder %v437, 113
        %v573 = vsel %vm572, %v569, %v571
        %v574 = vsel %vm572, %v571, %v569
        %575 = vset.pattern.permute.xlu0 6
        %576 = vperm.xlu0 %575, %v427
        %v577 = vpop.permute.xlu0 %576
        %v579 = vmul.f32 %v573, %v577
        %v580 = vmul.f32 %v574, %v577
        %v581 = vlaneseq
        %v582 = vshrl.u32 %v581, 7
        %v583 = vsub.s32 6, %v582
        %v584 = vrot.slane %v428, %v583
        %v585 = vlaneseq
        %v586 = vshrl.u32 %v585, 7
        %v587 = vsub.s32 6, %v586
        %v588 = vrot.slane %v429, %v587
        %v589 = vmul.f32 %v579, %v584
        %v590 = vmul.f32 %v580, %v588
        %v591 = vadd.f32 %v566, %v589
        %v592 = vadd.f32 %v567, %v590
        %593 = vrot.lane.b32.xlu0 %v425, 112
        %v594 = vpop.permute.xlu0 %593
        %595 = vrot.lane.b32.xlu0 %v426, 112
        %v596 = vpop.permute.xlu0 %595
        %vm597 = vcmp.lt.s32.totalorder %v437, 112
        %v598 = vsel %vm597, %v594, %v596
        %v599 = vsel %vm597, %v596, %v594
        %600 = vset.pattern.permute.xlu0 7
        %601 = vperm.xlu0 %600, %v427
        %v602 = vpop.permute.xlu0 %601
        %v604 = vmul.f32 %v598, %v602
        %v605 = vmul.f32 %v599, %v602
        %v606 = vlaneseq
        %v607 = vshrl.u32 %v606, 7
        %v608 = vsub.s32 7, %v607
        %v609 = vrot.slane %v428, %v608
        %v610 = vlaneseq
        %v611 = vshrl.u32 %v610, 7
        %v612 = vsub.s32 7, %v611
        %v613 = vrot.slane %v429, %v612
        %v614 = vmul.f32 %v604, %v609
        %v615 = vmul.f32 %v605, %v613
        %v616 = vadd.f32 %v591, %v614
        %v617 = vadd.f32 %v592, %v615
        %618 = vrot.lane.b32.xlu0 %v425, 111
        %v619 = vpop.permute.xlu0 %618
        %620 = vrot.lane.b32.xlu0 %v426, 111
        %v621 = vpop.permute.xlu0 %620
        %vm622 = vcmp.lt.s32.totalorder %v437, 111
        %v623 = vsel %vm622, %v619, %v621
        %v624 = vsel %vm622, %v621, %v619
        %625 = vset.pattern.permute.xlu0 8
        %626 = vperm.xlu0 %625, %v427
        %v627 = vpop.permute.xlu0 %626
        %v629 = vmul.f32 %v623, %v627
        %v630 = vmul.f32 %v624, %v627
        %v631 = vlaneseq
        %v632 = vshrl.u32 %v631, 7
        %v633 = vsub.s32 0, %v632
        %v634 = vrot.slane %v430, %v633
        %v635 = vlaneseq
        %v636 = vshrl.u32 %v635, 7
        %v637 = vsub.s32 0, %v636
        %v638 = vrot.slane %v431, %v637
        %v639 = vmul.f32 %v629, %v634
        %v640 = vmul.f32 %v630, %v638
        %v641 = vadd.f32 %v616, %v639
        %v642 = vadd.f32 %v617, %v640
        %v643 = vld [vmem:[%s4] sm:$0xf]
        %645 = vset.pattern.permute.xlu0 0
        %646 = vperm.xlu0 %645, %v643
        %v647 = vpop.permute.xlu0 %646
        %v649 = vadd.f32 %v641, %v647
        %v650 = vadd.f32 %v642, %v647
        %v651 = vmax.f32 %v649, 0.0
        %v652 = vmax.f32 %v650, 0.0
        %v653 = vld [vmem:[#allocation5] sm:$0xf]
        %v654 = vld [vmem:[%s6] sm:$0xf]
        %656 = vset.pattern.permute.xlu0 0
        %657 = vperm.xlu0 %656, %v654
        %v658 = vpop.permute.xlu0 %657
        %v661 = vsel %vm345, %v653, 0
        %v664 = vsel %vm349, %v651, 0
        %v667 = vsel %vm349, %v652, 0
        %669 = vmatprep.subr.mxu0 %v667
        %670 = vmatpush1.msra.mxu0 %v664
        %671 = vmatprep.subr.mxu0 0.0
        %672 = vmatpush1.msra.mxu0 0.0
        %673 = vmatprep.subr.mxu0 0.0
        %674 = vmatpush1.msra.mxu0 0.0
        %675 = vmatprep.subr.mxu0 0.0
        %676 = vmatpush1.msra.mxu0 0.0
        %677 = vmatprep.subr.mxu0 0.0
        %678 = vmatpush1.msra.mxu0 0.0
        %679 = vmatprep.subr.mxu0 0.0
        %680 = vmatpush1.msra.mxu0 0.0
        %681 = vmatprep.subr.mxu0 0.0
        %682 = vmatpush1.msra.mxu0 0.0
        %683 = vmatprep.subr.mxu0 0.0
        %684 = vmatpush1.msra.mxu0 0.0
        %685 = vmatprep.subr.mxu0 0.0
        %686 = vmatpush1.msra.mxu0 0.0
        %687 = vmatprep.subr.mxu0 0.0
        %688 = vmatpush1.msra.mxu0 0.0
        %689 = vmatprep.subr.mxu0 0.0
        %690 = vmatpush1.msra.mxu0 0.0
        %691 = vmatprep.subr.mxu0 0.0
        %692 = vmatpush1.msra.mxu0 0.0
        %693 = vmatprep.subr.mxu0 0.0
        %694 = vmatpush1.msra.mxu0 0.0
        %695 = vmatprep.subr.mxu0 0.0
        %696 = vmatpush1.msra.mxu0 0.0
        %697 = vmatprep.subr.mxu0 0.0
        %698 = vmatpush1.msra.mxu0 0.0
        %699 = vmatprep.subr.mxu0 0.0
        %700 = vmatpush1.msra.mxu0 0.0
        %701 = vmatprep.subr.mxu0 0.0
        %702 = vmatpush1.msra.mxu0 0.0
        %703 = vmatprep.subr.mxu0 0.0
        %704 = vmatpush1.msra.mxu0 0.0
        %705 = vmatprep.subr.mxu0 0.0
        %706 = vmatpush1.msra.mxu0 0.0
        %707 = vmatprep.subr.mxu0 0.0
        %708 = vmatpush1.msra.mxu0 0.0
        %709 = vmatprep.subr.mxu0 0.0
        %710 = vmatpush1.msra.mxu0 0.0
        %711 = vmatprep.subr.mxu0 0.0
        %712 = vmatpush1.msra.mxu0 0.0
        %713 = vmatprep.subr.mxu0 0.0
        %714 = vmatpush1.msra.mxu0 0.0
        %715 = vmatprep.subr.mxu0 0.0
        %716 = vmatpush1.msra.mxu0 0.0
        %717 = vmatprep.subr.mxu0 0.0
        %718 = vmatpush1.msra.mxu0 0.0
        %719 = vmatprep.subr.mxu0 0.0
        %720 = vmatpush1.msra.mxu0 0.0
        %721 = vmatprep.subr.mxu0 0.0
        %722 = vmatpush1.msra.mxu0 0.0
        %723 = vmatprep.subr.mxu0 0.0
        %724 = vmatpush1.msra.mxu0 0.0
        %725 = vmatprep.subr.mxu0 0.0
        %726 = vmatpush1.msra.mxu0 0.0
        %727 = vmatprep.subr.mxu0 0.0
        %728 = vmatpush1.msra.mxu0 0.0
        %729 = vmatprep.subr.mxu0 0.0
        %730 = vmatpush1.msra.mxu0 0.0
        %731 = vmatprep.subr.mxu0 0.0
        %732 = vmatpush1.msra.mxu0 0.0
        %733 = vmatprep.mubr.f32.mxu0 0.0
        %734 = vmatmul.mubr.f32.gmra.mrb[0].mxu0 %v661
        %v735 = vpop.f32.mrb[0].mxu0
        %v736 = vadd.f32 %v658, %v735
        %v737 = vpop.f32.mrb[0].mxu0
        %v738 = vadd.f32 %v658, %v737
        %739 = vdwg.mxu0
        %v741 = vadd.f32 %v736, %v335
        %v742 = vadd.f32 %v738, %v344
        %v743 = vmax.f32 %v741, 0.0
        %v744 = vmax.f32 %v742, 0.0
        %v747 = vcombine.low %v743, %v744
        %749 = vst [vmem:[%s334] sm:$0xff] %v747
        %s750 = sand.u32 %s207, 1
        %s751 = scalar_lea.sflag [#allocation4], %s750
        %s752 = sand.u32 %s207, 1
        %s753 = smul.addr %s752, 8
        %s754 = scalar_lea.vmem [#allocation7], %s753
        // Predicated region
        $region61: #{tpu_custom_call.1} parent=51 // pred_check
          %p755 = pneg %p217
        $region62: #{tpu_custom_call.1} parent=51 // pred_check_branch
          %757 = sbr.rel (%p755) target = $region64
        $region63: #{tpu_custom_call.1} parent=51 // pred_region
          %s759 = ssub.s32 128, 128
          %760 = vsyncadd %s751, %s759
          %s761 = smul.addr %s26, 2
          %s762 = smul.addr %s761, 64
          %s763 = scalar_lea.hbm %s8, %s762
          %s765 = sshll.u32 %s754, 4
          %s766 = int_to_ptr.vmem [resolvable:$true] %s765
          %768 = dma.vmem_to_hbm [thread:$0]  %s766, 128, %s763, %s751
        $region64: #{tpu_custom_call.1} parent=51 // pred_fallthru
          _
      $region52: #{tpu_custom_call.1} parent=5 // pred_fallthru
        _
      %p769 = scmp.le.s32.totalorder 2, %s21
      // Predicated region
      $region65: #{tpu_custom_call.1} parent=5 // pred_check
        %p770 = pneg %p769
      $region66: #{tpu_custom_call.1} parent=5 // pred_check_branch
        %772 = sbr.rel (%p770) target = $region68
      $region67: #{tpu_custom_call.1} parent=5 // pred_region
        %s773 = ssub.s32 %s21, 2
        // Predicated region
        $region69: #{tpu_custom_call.1} parent=67 // pred_check
          %p774 = pneg %p223
        $region70: #{tpu_custom_call.1} parent=67 // pred_check_branch
          %776 = sbr.rel (%p774) target = $region72
        $region71: #{tpu_custom_call.1} parent=67 // pred_region
          %s777 = sand.u32 %s208, 1
          %s778 = scalar_lea.sflag [#allocation4], %s777
          %s779 = sand.u32 %s208, 1
          %s780 = smul.addr %s779, 8
          %s781 = scalar_lea.vmem [#allocation7], %s780
          %782 = dma.done %s778, 128
        $region72: #{tpu_custom_call.1} parent=67 // pred_fallthru
          _
      $region68: #{tpu_custom_call.1} parent=5 // pred_fallthru
        _
    $region6: #{tpu_custom_call.1} parent=1 // loop_footer
      %s25 = sadd.s32 1, %s21
    $region7: #{tpu_custom_call.1} parent=1 // loop_footer_branch
      %20 = sbr.rel target = $region3
    $region8: #{tpu_custom_call.1} parent=1 // loop_exit
      _
    %783 = vsyncpa [#allocation3], 1
    %s784 = scalar_lea.sflag [#allocation3], 1
    %785 = vsyncpa %s784, 1
    %786 = vsyncpa [#allocation6], 1
    %787 = vsyncpa [#allocation4], 1
    %s788 = scalar_lea.sflag [#allocation4], 1
    %789 = vsyncpa %s788, 1

</llo_original>
